<compile_context>
chip_gen: v5e
topology: v5e:2x2
jax: 0.10.0
libtpu: 0.0.40
codegen_flags: <defaults>
</compile_context>

<pallas_src>
import functools

import jax
import jax.numpy as jnp
from jax.experimental import pallas as pl
from jax.experimental.pallas import tpu as pltpu

LANE = 128          # last block dim must be a multiple of 128 (lane width)
SUBLANE_BF16 = 16   # bf16 packs 16 rows per sublane group


def _round_up(n, m):
    return ((n + m - 1) // m) * m


def _pad2(a, rows, cols):
    return jnp.pad(a, ((0, rows - a.shape[0]), (0, cols - a.shape[1])))


def projector_kernel(x_ref, w_in_ref, b_in_ref, w_h_ref, b_h_ref,
                     w_out_ref, b_out_ref, o_ref):
    # input layer: bf16 MXU matmul with f32 accumulation; bias + ReLU in f32.
    h = jnp.dot(x_ref[...], w_in_ref[...], preferred_element_type=jnp.float32)
    h = jnp.maximum(h + b_in_ref[...], 0.0)
    # (last) hidden layer + ReLU — single downcast to bf16 before each dot.
    h = jnp.dot(h.astype(w_h_ref.dtype), w_h_ref[...],
                preferred_element_type=jnp.float32)
    h = jnp.maximum(h + b_h_ref[...], 0.0)
    # output layer
    out = jnp.dot(h.astype(w_out_ref.dtype), w_out_ref[...],
                  preferred_element_type=jnp.float32) + b_out_ref[...]
    o_ref[...] = out.astype(o_ref.dtype)


def _const_spec(shape, single_buffer):
    """Grid-invariant weight/bias block: single-buffer to halve its VMEM."""
    if single_buffer:
        return pl.BlockSpec(shape, lambda i: (0, 0), pipeline_mode=pl.Buffered(1))
    return pl.BlockSpec(shape, lambda i: (0, 0))


@functools.partial(jax.jit, static_argnames=("tm_max", "single_buffer_weights"))
def projector(x, params, *, tm_max=512, single_buffer_weights=True):
    """x: [batch, seq, d_model] -> [batch, seq, d_model]."""
    w_in, b_in, w_h, b_h, w_out, b_out = params
    B, L, D = x.shape
    H = w_in.shape[1]
    N = B * L

    # Lane-dense feature dims; bf16-friendly row tiling.
    Dp = _round_up(D, LANE)
    Hp = _round_up(H, LANE)
    tm = max(SUBLANE_BF16, min(tm_max, _round_up(N, SUBLANE_BF16)))
    Np = _round_up(N, tm)
    grid = (Np // tm,)

    # Pad + cast operands. Matmul operands in bf16, biases stay f32 (added to
    # the f32 accumulator). Zero padding is exact: padded hidden columns stay 0.
    x2 = _pad2(x.reshape(N, D), Np, Dp).astype(jnp.bfloat16)
    w_in_p = _pad2(w_in, Dp, Hp).astype(jnp.bfloat16)
    w_h_p = _pad2(w_h, Hp, Hp).astype(jnp.bfloat16)
    w_out_p = _pad2(w_out, Hp, Dp).astype(jnp.bfloat16)
    b_in_p = _pad2(b_in, 1, Hp).astype(jnp.float32)
    b_h_p = _pad2(b_h, 1, Hp).astype(jnp.float32)
    b_out_p = _pad2(b_out, 1, Dp).astype(jnp.float32)

    # Explicit VMEM budget: resident weights (+biases), double-buffered x/out
    # tiles, plus headroom for compiler scratch. Capped at v7x physical (64 MiB).
    weight_bytes = (Dp * Hp + Hp * Hp + Hp * Dp) * 2 + (2 * Hp + Dp) * 4
    if not single_buffer_weights:
        weight_bytes *= 2
    io_bytes = 2 * tm * Dp * (2 + 4)   # 2 bufs x (bf16 in + f32 out) tiles
    vmem_bytes = int(weight_bytes + io_bytes + (4 << 20))
    vmem_bytes = max(16 << 20, min(vmem_bytes, 64 << 20))

    flops = 2 * Np * (Dp * Hp + Hp * Hp + Hp * Dp)
    bytes_accessed = (Np * Dp * 2) + (Np * Dp * 4) + weight_bytes
    cost = pl.CostEstimate(flops=flops, transcendentals=0,
                           bytes_accessed=bytes_accessed)

    out2 = pl.pallas_call(
        projector_kernel,
        out_shape=jax.ShapeDtypeStruct((Np, Dp), x.dtype),
        grid_spec=pltpu.PrefetchScalarGridSpec(
            num_scalar_prefetch=0,
            grid=grid,
            in_specs=[
                pl.BlockSpec((tm, Dp), lambda i: (i, 0)),          # x rows
                _const_spec((Dp, Hp), single_buffer_weights),      # W_in
                _const_spec((1, Hp), single_buffer_weights),       # b_in (f32)
                _const_spec((Hp, Hp), single_buffer_weights),      # W_hidden
                _const_spec((1, Hp), single_buffer_weights),       # b_hidden (f32)
                _const_spec((Hp, Dp), single_buffer_weights),      # W_out
                _const_spec((1, Dp), single_buffer_weights),       # b_out (f32)
            ],
            out_specs=pl.BlockSpec((tm, Dp), lambda i: (i, 0)),
        ),
        compiler_params=pltpu.CompilerParams(
            dimension_semantics=("parallel",),
            vmem_limit_bytes=vmem_bytes),
        cost_estimate=cost,
    )(x2, w_in_p, b_in_p, w_h_p, b_h_p, w_out_p, b_out_p)

    return out2[:N, :D].reshape(B, L, D)


def init_params(key, d_model):
    """Deterministic synthetic params matching nn.Linear shapes (stored transposed)."""
    hidden = 2 * d_model
    ks = jax.random.split(key, 6)

    def linear(kw, kb, fan_in, fan_out):
        bound = 1.0 / (fan_in ** 0.5)
        w = jax.random.uniform(kw, (fan_in, fan_out), jnp.float32, -bound, bound)
        b = jax.random.uniform(kb, (1, fan_out), jnp.float32, -bound, bound)
        return w, b

    w_in, b_in = linear(ks[0], ks[1], d_model, hidden)       # input_layer Linear
    w_h, b_h = linear(ks[2], ks[3], hidden, hidden)           # hidden_layers[0] Linear
    w_out, b_out = linear(ks[4], ks[5], hidden, d_model)      # output_layer Linear
    return (w_in, b_in, w_h, b_h, w_out, b_out)


def projector_ref_mixed(x, params):
    """Pure-JAX reference matching the kernel's precision strategy
    (bf16 operands, f32 accumulation, bias/ReLU in f32)."""
    w_in, b_in, w_h, b_h, w_out, b_out = params
    bf = jnp.bfloat16
    shape = x.shape
    x2 = x.reshape(-1, shape[-1]).astype(bf)

    def mm(a, b):
        return jnp.dot(a, b.astype(bf), preferred_element_type=jnp.float32)

    h = jnp.maximum(mm(x2, w_in) + b_in, 0.0).astype(bf)
    h = jnp.maximum(mm(h, w_h) + b_h, 0.0).astype(bf)
    out = mm(h, w_out) + b_out
    return out.reshape(shape)


def projector_ref_f32(x, params):
    """Full-f32 reference of the (bug-faithful) PyTorch forward, eval mode."""
    w_in, b_in, w_h, b_h, w_out, b_out = params
    h = jnp.maximum(x @ w_in + b_in, 0.0)
    h = jnp.maximum(h @ w_h + b_h, 0.0)
    return h @ w_out + b_out


if __name__ == "__main__":
    key = jax.random.PRNGKey(0)
    d_model = 32
    batch, seq = 2, 8

    kx, kp = jax.random.split(key)
    x = jax.random.normal(kx, (batch, seq, d_model), jnp.float32)
    params = init_params(kp, d_model)

    try:
        out = jax.block_until_ready(projector(x, params))
    except Exception:
        # Fallback if pl.Buffered(1) single-buffering is unsupported on this
        # jax/libtpu combination: plain double-buffered weight blocks.
        out = jax.block_until_ready(
            projector(x, params, single_buffer_weights=False))

    assert out.shape == (batch, seq, d_model)

    ref = projector_ref_mixed(x, params)          # same bf16/f32 strategy: tight
    assert jnp.allclose(out, ref, atol=1e-3, rtol=1e-3), "mismatch vs mixed ref"

    ref32 = projector_ref_f32(x, params)          # full-f32 sanity: loose (bf16)
    assert jnp.allclose(out, ref32, atol=1e-1, rtol=1e-1), "mismatch vs f32 ref"

    print("KERNEL_OK")
</pallas_src>

<mosaic_0001>
module attributes {stable_mosaic.version = 11 : i64} {
  func.func @projector_kernel(%arg0: i32, %arg1: memref<16x128xbf16, #tpu.memory_space<vmem>>, %arg2: memref<128x128xbf16, #tpu.memory_space<vmem>>, %arg3: memref<1x128xf32, #tpu.memory_space<vmem>>, %arg4: memref<128x128xbf16, #tpu.memory_space<vmem>>, %arg5: memref<1x128xf32, #tpu.memory_space<vmem>>, %arg6: memref<128x128xbf16, #tpu.memory_space<vmem>>, %arg7: memref<1x128xf32, #tpu.memory_space<vmem>>, %arg8: memref<16x128xf32, #tpu.memory_space<vmem>>) attributes {dimension_semantics = [#tpu.dimension_semantics<parallel>], iteration_bounds = array<i64: 1>, scalar_prefetch = 0 : i64, scratch_operands = 0 : i64, tpu.core_type = #tpu.core_type<tc>, window_params = [{transform_indices = @transform_0, window_bounds = array<i64: 16, 128>}, {pipeline_mode = #tpu.pipeline_mode<synchronous>, transform_indices = @transform_1, window_bounds = array<i64: 128, 128>}, {pipeline_mode = #tpu.pipeline_mode<synchronous>, transform_indices = @transform_2, window_bounds = array<i64: 1, 128>}, {pipeline_mode = #tpu.pipeline_mode<synchronous>, transform_indices = @transform_3, window_bounds = array<i64: 128, 128>}, {pipeline_mode = #tpu.pipeline_mode<synchronous>, transform_indices = @transform_4, window_bounds = array<i64: 1, 128>}, {pipeline_mode = #tpu.pipeline_mode<synchronous>, transform_indices = @transform_5, window_bounds = array<i64: 128, 128>}, {pipeline_mode = #tpu.pipeline_mode<synchronous>, transform_indices = @transform_6, window_bounds = array<i64: 1, 128>}, {transform_indices = @transform_7, window_bounds = array<i64: 16, 128>}]} {
    %c0 = arith.constant 0 : index
    %c0_0 = arith.constant 0 : index
    %0 = vector.load %arg1[%c0, %c0_0] : memref<16x128xbf16, #tpu.memory_space<vmem>>, vector<16x128xbf16>
    %c0_1 = arith.constant 0 : index
    %c0_2 = arith.constant 0 : index
    %1 = vector.load %arg2[%c0_1, %c0_2] : memref<128x128xbf16, #tpu.memory_space<vmem>>, vector<128x128xbf16>
    %cst = arith.constant dense<0.000000e+00> : vector<16x128xf32>
    %2 = tpu.matmul %0, %1, %cst {dimension_numbers = #tpu.dot_dimension_numbers<[1], [0], [0], [1], [0, 0, 1, 1], [], []>} : vector<16x128xbf16>, vector<128x128xbf16>, vector<16x128xf32> -> vector<16x128xf32>
    %c0_3 = arith.constant 0 : index
    %c0_4 = arith.constant 0 : index
    %3 = vector.load %arg3[%c0_3, %c0_4] : memref<1x128xf32, #tpu.memory_space<vmem>>, vector<1x128xf32>
    %4 = vector.broadcast %3 : vector<1x128xf32> to vector<16x128xf32>
    %5 = arith.addf %2, %4 : vector<16x128xf32>
    %cst_5 = arith.constant 0.000000e+00 : f32
    %6 = vector.broadcast %cst_5 : f32 to vector<16x128xf32>
    %7 = arith.maximumf %5, %6 : vector<16x128xf32>
    %8 = arith.truncf %7 : vector<16x128xf32> to vector<16x128xbf16>
    %c0_6 = arith.constant 0 : index
    %c0_7 = arith.constant 0 : index
    %9 = vector.load %arg4[%c0_6, %c0_7] : memref<128x128xbf16, #tpu.memory_space<vmem>>, vector<128x128xbf16>
    %cst_8 = arith.constant dense<0.000000e+00> : vector<16x128xf32>
    %10 = tpu.matmul %8, %9, %cst_8 {dimension_numbers = #tpu.dot_dimension_numbers<[1], [0], [0], [1], [0, 0, 1, 1], [], []>} : vector<16x128xbf16>, vector<128x128xbf16>, vector<16x128xf32> -> vector<16x128xf32>
    %c0_9 = arith.constant 0 : index
    %c0_10 = arith.constant 0 : index
    %11 = vector.load %arg5[%c0_9, %c0_10] : memref<1x128xf32, #tpu.memory_space<vmem>>, vector<1x128xf32>
    %12 = vector.broadcast %11 : vector<1x128xf32> to vector<16x128xf32>
    %13 = arith.addf %10, %12 : vector<16x128xf32>
    %cst_11 = arith.constant 0.000000e+00 : f32
    %14 = vector.broadcast %cst_11 : f32 to vector<16x128xf32>
    %15 = arith.maximumf %13, %14 : vector<16x128xf32>
    %16 = arith.truncf %15 : vector<16x128xf32> to vector<16x128xbf16>
    %c0_12 = arith.constant 0 : index
    %c0_13 = arith.constant 0 : index
    %17 = vector.load %arg6[%c0_12, %c0_13] : memref<128x128xbf16, #tpu.memory_space<vmem>>, vector<128x128xbf16>
    %cst_14 = arith.constant dense<0.000000e+00> : vector<16x128xf32>
    %18 = tpu.matmul %16, %17, %cst_14 {dimension_numbers = #tpu.dot_dimension_numbers<[1], [0], [0], [1], [0, 0, 1, 1], [], []>} : vector<16x128xbf16>, vector<128x128xbf16>, vector<16x128xf32> -> vector<16x128xf32>
    %c0_15 = arith.constant 0 : index
    %c0_16 = arith.constant 0 : index
    %19 = vector.load %arg7[%c0_15, %c0_16] : memref<1x128xf32, #tpu.memory_space<vmem>>, vector<1x128xf32>
    %20 = vector.broadcast %19 : vector<1x128xf32> to vector<16x128xf32>
    %21 = arith.addf %18, %20 : vector<16x128xf32>
    %c0_17 = arith.constant 0 : index
    %c0_18 = arith.constant 0 : index
    %22 = vector.load %arg8[%c0_17, %c0_18] : memref<16x128xf32, #tpu.memory_space<vmem>>, vector<16x128xf32>
    tpu.vector_store %arg8[%c0_17, %c0_18], %21 {strides = array<i32>} : memref<16x128xf32, #tpu.memory_space<vmem>>, vector<16x128xf32>,
    return
  }
  func.func @transform_0(%arg0: i32) -> (i32, i32) {
    %c0_i32 = arith.constant 0 : i32
    %c0_i32_0 = arith.constant 0 : i32
    return %arg0, %c0_i32 : i32, i32
  }
  func.func @transform_1(%arg0: i32) -> (i32, i32) {
    %c0_i32 = arith.constant 0 : i32
    %c0_i32_0 = arith.constant 0 : i32
    %c0_i32_1 = arith.constant 0 : i32
    return %c0_i32, %c0_i32_0 : i32, i32
  }
  func.func @transform_2(%arg0: i32) -> (i32, i32) {
    %c0_i32 = arith.constant 0 : i32
    %c0_i32_0 = arith.constant 0 : i32
    %c0_i32_1 = arith.constant 0 : i32
    return %c0_i32, %c0_i32_0 : i32, i32
  }
  func.func @transform_3(%arg0: i32) -> (i32, i32) {
    %c0_i32 = arith.constant 0 : i32
    %c0_i32_0 = arith.constant 0 : i32
    %c0_i32_1 = arith.constant 0 : i32
    return %c0_i32, %c0_i32_0 : i32, i32
  }
  func.func @transform_4(%arg0: i32) -> (i32, i32) {
    %c0_i32 = arith.constant 0 : i32
    %c0_i32_0 = arith.constant 0 : i32
    %c0_i32_1 = arith.constant 0 : i32
    return %c0_i32, %c0_i32_0 : i32, i32
  }
  func.func @transform_5(%arg0: i32) -> (i32, i32) {
    %c0_i32 = arith.constant 0 : i32
    %c0_i32_0 = arith.constant 0 : i32
    %c0_i32_1 = arith.constant 0 : i32
    return %c0_i32, %c0_i32_0 : i32, i32
  }
  func.func @transform_6(%arg0: i32) -> (i32, i32) {
    %c0_i32 = arith.constant 0 : i32
    %c0_i32_0 = arith.constant 0 : i32
    %c0_i32_1 = arith.constant 0 : i32
    return %c0_i32, %c0_i32_0 : i32, i32
  }
  func.func @transform_7(%arg0: i32) -> (i32, i32) {
    %c0_i32 = arith.constant 0 : i32
    %c0_i32_0 = arith.constant 0 : i32
    return %arg0, %c0_i32 : i32, i32
  }
}

module attributes {stable_mosaic.version = 11 : i64} {
  func.func @projector_kernel(%arg0: i32, %arg1: memref<16x128xbf16, #tpu.memory_space<vmem>>, %arg2: memref<128x128xbf16, #tpu.memory_space<vmem>>, %arg3: memref<1x128xf32, #tpu.memory_space<vmem>>, %arg4: memref<128x128xbf16, #tpu.memory_space<vmem>>, %arg5: memref<1x128xf32, #tpu.memory_space<vmem>>, %arg6: memref<128x128xbf16, #tpu.memory_space<vmem>>, %arg7: memref<1x128xf32, #tpu.memory_space<vmem>>, %arg8: memref<16x128xf32, #tpu.memory_space<vmem>>) attributes {dimension_semantics = [#tpu.dimension_semantics<parallel>], iteration_bounds = array<i64: 1>, scalar_prefetch = 0 : i64, scratch_operands = 0 : i64, tpu.core_type = #tpu.core_type<tc>, window_params = [{transform_indices = @transform_0, window_bounds = array<i64: 16, 128>}, {pipeline_mode = #tpu.pipeline_mode<synchronous>, transform_indices = @transform_1, window_bounds = array<i64: 128, 128>}, {pipeline_mode = #tpu.pipeline_mode<synchronous>, transform_indices = @transform_2, window_bounds = array<i64: 1, 128>}, {pipeline_mode = #tpu.pipeline_mode<synchronous>, transform_indices = @transform_3, window_bounds = array<i64: 128, 128>}, {pipeline_mode = #tpu.pipeline_mode<synchronous>, transform_indices = @transform_4, window_bounds = array<i64: 1, 128>}, {pipeline_mode = #tpu.pipeline_mode<synchronous>, transform_indices = @transform_5, window_bounds = array<i64: 128, 128>}, {pipeline_mode = #tpu.pipeline_mode<synchronous>, transform_indices = @transform_6, window_bounds = array<i64: 1, 128>}, {transform_indices = @transform_7, window_bounds = array<i64: 16, 128>}]} {
    %c0 = arith.constant 0 : index
    %c0_0 = arith.constant 0 : index
    %0 = vector.load %arg1[%c0, %c0_0] : memref<16x128xbf16, #tpu.memory_space<vmem>>, vector<16x128xbf16>
    %c0_1 = arith.constant 0 : index
    %c0_2 = arith.constant 0 : index
    %1 = vector.load %arg2[%c0_1, %c0_2] : memref<128x128xbf16, #tpu.memory_space<vmem>>, vector<128x128xbf16>
    %cst = arith.constant dense<0.000000e+00> : vector<16x128xf32>
    %2 = tpu.matmul %0, %1, %cst {dimension_numbers = #tpu.dot_dimension_numbers<[1], [0], [0], [1], [0, 0, 1, 1], [], []>} : vector<16x128xbf16>, vector<128x128xbf16>, vector<16x128xf32> -> vector<16x128xf32>
    %c0_3 = arith.constant 0 : index
    %c0_4 = arith.constant 0 : index
    %3 = vector.load %arg3[%c0_3, %c0_4] : memref<1x128xf32, #tpu.memory_space<vmem>>, vector<1x128xf32>
    %4 = vector.broadcast %3 : vector<1x128xf32> to vector<16x128xf32>
    %5 = arith.addf %2, %4 : vector<16x128xf32>
    %cst_5 = arith.constant 0.000000e+00 : f32
    %6 = vector.broadcast %cst_5 : f32 to vector<16x128xf32>
    %7 = arith.maximumf %5, %6 : vector<16x128xf32>
    %8 = arith.truncf %7 : vector<16x128xf32> to vector<16x128xbf16>
    %c0_6 = arith.constant 0 : index
    %c0_7 = arith.constant 0 : index
    %9 = vector.load %arg4[%c0_6, %c0_7] : memref<128x128xbf16, #tpu.memory_space<vmem>>, vector<128x128xbf16>
    %cst_8 = arith.constant dense<0.000000e+00> : vector<16x128xf32>
    %10 = tpu.matmul %8, %9, %cst_8 {dimension_numbers = #tpu.dot_dimension_numbers<[1], [0], [0], [1], [0, 0, 1, 1], [], []>} : vector<16x128xbf16>, vector<128x128xbf16>, vector<16x128xf32> -> vector<16x128xf32>
    %c0_9 = arith.constant 0 : index
    %c0_10 = arith.constant 0 : index
    %11 = vector.load %arg5[%c0_9, %c0_10] : memref<1x128xf32, #tpu.memory_space<vmem>>, vector<1x128xf32>
    %12 = vector.broadcast %11 : vector<1x128xf32> to vector<16x128xf32>
    %13 = arith.addf %10, %12 : vector<16x128xf32>
    %cst_11 = arith.constant 0.000000e+00 : f32
    %14 = vector.broadcast %cst_11 : f32 to vector<16x128xf32>
    %15 = arith.maximumf %13, %14 : vector<16x128xf32>
    %16 = arith.truncf %15 : vector<16x128xf32> to vector<16x128xbf16>
    %c0_12 = arith.constant 0 : index
    %c0_13 = arith.constant 0 : index
    %17 = vector.load %arg6[%c0_12, %c0_13] : memref<128x128xbf16, #tpu.memory_space<vmem>>, vector<128x128xbf16>
    %cst_14 = arith.constant dense<0.000000e+00> : vector<16x128xf32>
    %18 = tpu.matmul %16, %17, %cst_14 {dimension_numbers = #tpu.dot_dimension_numbers<[1], [0], [0], [1], [0, 0, 1, 1], [], []>} : vector<16x128xbf16>, vector<128x128xbf16>, vector<16x128xf32> -> vector<16x128xf32>
    %c0_15 = arith.constant 0 : index
    %c0_16 = arith.constant 0 : index
    %19 = vector.load %arg7[%c0_15, %c0_16] : memref<1x128xf32, #tpu.memory_space<vmem>>, vector<1x128xf32>
    %20 = vector.broadcast %19 : vector<1x128xf32> to vector<16x128xf32>
    %21 = arith.addf %18, %20 : vector<16x128xf32>
    %c0_17 = arith.constant 0 : index
    %c0_18 = arith.constant 0 : index
    %22 = vector.load %arg8[%c0_17, %c0_18] : memref<16x128xf32, #tpu.memory_space<vmem>>, vector<16x128xf32>
    tpu.vector_store %arg8[%c0_17, %c0_18], %21 {strides = array<i32>} : memref<16x128xf32, #tpu.memory_space<vmem>>, vector<16x128xf32>,
    return
  }
  func.func @transform_0(%arg0: i32) -> (i32, i32) {
    %c0_i32 = arith.constant 0 : i32
    %c0_i32_0 = arith.constant 0 : i32
    return %arg0, %c0_i32 : i32, i32
  }
  func.func @transform_1(%arg0: i32) -> (i32, i32) {
    %c0_i32 = arith.constant 0 : i32
    %c0_i32_0 = arith.constant 0 : i32
    %c0_i32_1 = arith.constant 0 : i32
    return %c0_i32, %c0_i32_0 : i32, i32
  }
  func.func @transform_2(%arg0: i32) -> (i32, i32) {
    %c0_i32 = arith.constant 0 : i32
    %c0_i32_0 = arith.constant 0 : i32
    %c0_i32_1 = arith.constant 0 : i32
    return %c0_i32, %c0_i32_0 : i32, i32
  }
  func.func @transform_3(%arg0: i32) -> (i32, i32) {
    %c0_i32 = arith.constant 0 : i32
    %c0_i32_0 = arith.constant 0 : i32
    %c0_i32_1 = arith.constant 0 : i32
    return %c0_i32, %c0_i32_0 : i32, i32
  }
  func.func @transform_4(%arg0: i32) -> (i32, i32) {
    %c0_i32 = arith.constant 0 : i32
    %c0_i32_0 = arith.constant 0 : i32
    %c0_i32_1 = arith.constant 0 : i32
    return %c0_i32, %c0_i32_0 : i32, i32
  }
  func.func @transform_5(%arg0: i32) -> (i32, i32) {
    %c0_i32 = arith.constant 0 : i32
    %c0_i32_0 = arith.constant 0 : i32
    %c0_i32_1 = arith.constant 0 : i32
    return %c0_i32, %c0_i32_0 : i32, i32
  }
  func.func @transform_6(%arg0: i32) -> (i32, i32) {
    %c0_i32 = arith.constant 0 : i32
    %c0_i32_0 = arith.constant 0 : i32
    %c0_i32_1 = arith.constant 0 : i32
    return %c0_i32, %c0_i32_0 : i32, i32
  }
  func.func @transform_7(%arg0: i32) -> (i32, i32) {
    %c0_i32 = arith.constant 0 : i32
    %c0_i32_0 = arith.constant 0 : i32
    return %arg0, %c0_i32 : i32, i32
  }
}

</mosaic_0001>

<llo_original>
// kernel: projector.1
$region0: #{projector.1}
  #allocation0 [shape = 'u32[]', space=smem, size = 0x4, offset = 0x4, fixed_abs, tag = 'smem constant byte address 0x4 - core index']
  #allocation1 [shape = 'u32[72,128]{1,0:T(1,128)}', space=vmem, size = 0x9000, scoped, tag = 'internal scratch']
  %s0 = inlined_call_operand.vmem [shape: bf16[16,128], index: 0, kind: input, shape index: {}]
  %s1 = inlined_call_operand.vmem [shape: bf16[128,128], index: 1, kind: input, shape index: {}]
  %s2 = inlined_call_operand.vmem [shape: f32[1,128], index: 2, kind: input, shape index: {}]
  %s3 = inlined_call_operand.vmem [shape: bf16[128,128], index: 3, kind: input, shape index: {}]
  %s4 = inlined_call_operand.vmem [shape: f32[1,128], index: 4, kind: input, shape index: {}]
  %s5 = inlined_call_operand.vmem [shape: bf16[128,128], index: 5, kind: input, shape index: {}]
  %s6 = inlined_call_operand.vmem [shape: f32[1,128], index: 6, kind: input, shape index: {}]
  %s7 = inlined_call_operand.vmem [shape: f32[16,128], index: 7, kind: output, shape index: {}]
  %s8 = sld [smem:[#allocation0]]
  $region38: #{projector.1} parent=0
    _
  %s10 = ssub.s32 1, %s8
  %s11 = scalar_select 0, %s10, %s8
  // Predicated region
  $region2: #{projector.1} parent=0 // pred_check
    _
  $region3: #{projector.1} parent=0 // pred_check_branch
    %13 = sbr.rel (0) target = $region5
  $region4: #{projector.1} parent=0 // pred_region
    _
  $region5: #{projector.1} parent=0 // pred_fallthru
    _
  // Predicated region
  $region6: #{projector.1} parent=0 // pred_check
    _
  $region7: #{projector.1} parent=0 // pred_check_branch
    %15 = sbr.rel (0) target = $region9
  $region8: #{projector.1} parent=0 // pred_region
    _
  $region9: #{projector.1} parent=0 // pred_fallthru
    _
  // Predicated region
  $region10: #{projector.1} parent=0 // pred_check
    _
  $region11: #{projector.1} parent=0 // pred_check_branch
    %17 = sbr.rel (0) target = $region13
  $region12: #{projector.1} parent=0 // pred_region
    _
  $region13: #{projector.1} parent=0 // pred_fallthru
    _
  // Predicated region
  $region14: #{projector.1} parent=0 // pred_check
    _
  $region15: #{projector.1} parent=0 // pred_check_branch
    %19 = sbr.rel (0) target = $region17
  $region16: #{projector.1} parent=0 // pred_region
    _
  $region17: #{projector.1} parent=0 // pred_fallthru
    _
  // Predicated region
  $region18: #{projector.1} parent=0 // pred_check
    _
  $region19: #{projector.1} parent=0 // pred_check_branch
    %21 = sbr.rel (0) target = $region21
  $region20: #{projector.1} parent=0 // pred_region
    _
  $region21: #{projector.1} parent=0 // pred_fallthru
    _
  // Predicated region
  $region22: #{projector.1} parent=0 // pred_check
    _
  $region23: #{projector.1} parent=0 // pred_check_branch
    %23 = sbr.rel (0) target = $region25
  $region24: #{projector.1} parent=0 // pred_region
    _
  $region25: #{projector.1} parent=0 // pred_fallthru
    _
  // Predicated region
  $region26: #{projector.1} parent=0 // pred_check
    _
  $region27: #{projector.1} parent=0 // pred_check_branch
    %25 = sbr.rel (0) target = $region29
  $region28: #{projector.1} parent=0 // pred_region
    _
  $region29: #{projector.1} parent=0 // pred_fallthru
    _
  %v26 = vld [vmem:[%s0] sm:$0xf]
  %v27 = vld [vmem:[%s0 + $0x4] sm:$0xf]
  %v28 = vld [vmem:[%s1] sm:$0xf]
  %v29 = vld [vmem:[%s1 + $0x4] sm:$0xf]
  %v30 = vld [vmem:[%s1 + $0x8] sm:$0xf]
  %v31 = vld [vmem:[%s1 + $0xc] sm:$0xf]
  %v32 = vld [vmem:[%s1 + $0x10] sm:$0xf]
  %v33 = vld [vmem:[%s1 + $0x14] sm:$0xf]
  %v34 = vld [vmem:[%s1 + $0x18] sm:$0xf]
  %v35 = vld [vmem:[%s1 + $0x1c] sm:$0xf]
  %v36 = vld [vmem:[%s1 + $0x20] sm:$0xf]
  %v37 = vld [vmem:[%s1 + $0x24] sm:$0xf]
  %v38 = vld [vmem:[%s1 + $0x28] sm:$0xf]
  %v39 = vld [vmem:[%s1 + $0x2c] sm:$0xf]
  %v40 = vld [vmem:[%s1 + $0x30] sm:$0xf]
  %v41 = vld [vmem:[%s1 + $0x34] sm:$0xf]
  %v42 = vld [vmem:[%s1 + $0x38] sm:$0xf]
  %v43 = vld [vmem:[%s1 + $0x3c] sm:$0xf]
  %v44 = vld [vmem:[%s2] sm:$0x1]
  %v46 = vperm.slane %v44, 0
  %v50 = vunpack.c.l.b16 %v26
  %v51 = vunpack.c.l.b16 %v27
  %v52 = vpack.c.b16 %v51, %v50
  %v70 = vunpack.c.l.b16 %v28
  %v71 = vunpack.c.l.b16 %v29
  %v72 = vunpack.c.l.b16 %v30
  %v73 = vunpack.c.l.b16 %v31
  %v74 = vunpack.c.l.b16 %v32
  %v75 = vunpack.c.l.b16 %v33
  %v76 = vunpack.c.l.b16 %v34
  %v77 = vunpack.c.l.b16 %v35
  %v78 = vunpack.c.l.b16 %v36
  %v79 = vunpack.c.l.b16 %v37
  %v80 = vunpack.c.l.b16 %v38
  %v81 = vunpack.c.l.b16 %v39
  %v82 = vunpack.c.l.b16 %v40
  %v83 = vunpack.c.l.b16 %v41
  %v84 = vunpack.c.l.b16 %v42
  %v85 = vunpack.c.l.b16 %v43
  %v86 = vpack.c.b16 %v71, %v70
  %v87 = vpack.c.b16 %v73, %v72
  %v88 = vpack.c.b16 %v75, %v74
  %v89 = vpack.c.b16 %v77, %v76
  %v90 = vpack.c.b16 %v79, %v78
  %v91 = vpack.c.b16 %v81, %v80
  %v92 = vpack.c.b16 %v83, %v82
  %v93 = vpack.c.b16 %v85, %v84
  %102 = vmatpush.bf16.msra.mxu0 %v93
  %103 = vmatpush.bf16.msra.mxu0 %v92
  %104 = vmatpush.bf16.msra.mxu0 %v91
  %105 = vmatpush.bf16.msra.mxu0 %v90
  %106 = vmatpush.bf16.msra.mxu0 %v89
  %107 = vmatpush.bf16.msra.mxu0 %v88
  %108 = vmatpush.bf16.msra.mxu0 %v87
  %109 = vmatpush.bf16.msra.mxu0 %v86
  %110 = vmatmul.bf16.gmra.mxu0 %v52
  %v111 = vpop.f32.mrf.mxu0
  %v112 = vadd.f32 %v46, %v111
  %v113 = vpop.f32.mrf.mxu0
  %v114 = vadd.f32 %v46, %v113
  %115 = vdwg.mxu0
  %v116 = vmax.f32 %v112, 0.0
  %v117 = vmax.f32 %v114, 0.0
  %v118 = vpack.c.bf16 %v117, %v116
  %v119 = vld [vmem:[%s3] sm:$0xf]
  %v120 = vld [vmem:[%s3 + $0x4] sm:$0xf]
  %v121 = vld [vmem:[%s3 + $0x8] sm:$0xf]
  %v122 = vld [vmem:[%s3 + $0xc] sm:$0xf]
  %v123 = vld [vmem:[%s3 + $0x10] sm:$0xf]
  %v124 = vld [vmem:[%s3 + $0x14] sm:$0xf]
  %v125 = vld [vmem:[%s3 + $0x18] sm:$0xf]
  %v126 = vld [vmem:[%s3 + $0x1c] sm:$0xf]
  %v127 = vld [vmem:[%s3 + $0x20] sm:$0xf]
  %v128 = vld [vmem:[%s3 + $0x24] sm:$0xf]
  %v129 = vld [vmem:[%s3 + $0x28] sm:$0xf]
  %v130 = vld [vmem:[%s3 + $0x2c] sm:$0xf]
  %v131 = vld [vmem:[%s3 + $0x30] sm:$0xf]
  %v132 = vld [vmem:[%s3 + $0x34] sm:$0xf]
  %v133 = vld [vmem:[%s3 + $0x38] sm:$0xf]
  %v134 = vld [vmem:[%s3 + $0x3c] sm:$0xf]
  %v135 = vld [vmem:[%s4] sm:$0x1]
  %v137 = vperm.slane %v135, 0
  %v155 = vunpack.c.l.b16 %v119
  %v156 = vunpack.c.l.b16 %v120
  %v157 = vunpack.c.l.b16 %v121
  %v158 = vunpack.c.l.b16 %v122
  %v159 = vunpack.c.l.b16 %v123
  %v160 = vunpack.c.l.b16 %v124
  %v161 = vunpack.c.l.b16 %v125
  %v162 = vunpack.c.l.b16 %v126
  %v163 = vunpack.c.l.b16 %v127
  %v164 = vunpack.c.l.b16 %v128
  %v165 = vunpack.c.l.b16 %v129
  %v166 = vunpack.c.l.b16 %v130
  %v167 = vunpack.c.l.b16 %v131
  %v168 = vunpack.c.l.b16 %v132
  %v169 = vunpack.c.l.b16 %v133
  %v170 = vunpack.c.l.b16 %v134
  %v171 = vpack.c.b16 %v156, %v155
  %v172 = vpack.c.b16 %v158, %v157
  %v173 = vpack.c.b16 %v160, %v159
  %v174 = vpack.c.b16 %v162, %v161
  %v175 = vpack.c.b16 %v164, %v163
  %v176 = vpack.c.b16 %v166, %v165
  %v177 = vpack.c.b16 %v168, %v167
  %v178 = vpack.c.b16 %v170, %v169
  %187 = vmatpush.bf16.msra.mxu0 %v178
  %188 = vmatpush.bf16.msra.mxu0 %v177
  %189 = vmatpush.bf16.msra.mxu0 %v176
  %190 = vmatpush.bf16.msra.mxu0 %v175
  %191 = vmatpush.bf16.msra.mxu0 %v174
  %192 = vmatpush.bf16.msra.mxu0 %v173
  %193 = vmatpush.bf16.msra.mxu0 %v172
  %194 = vmatpush.bf16.msra.mxu0 %v171
  %195 = vmatmul.bf16.gmra.mxu0 %v118
  %v196 = vpop.f32.mrf.mxu0
  %v197 = vadd.f32 %v137, %v196
  %v198 = vpop.f32.mrf.mxu0
  %v199 = vadd.f32 %v137, %v198
  %200 = vdwg.mxu0
  %v201 = vmax.f32 %v197, 0.0
  %v202 = vmax.f32 %v199, 0.0
  %v203 = vpack.c.bf16 %v202, %v201
  %v204 = vld [vmem:[%s5] sm:$0xf]
  %v205 = vld [vmem:[%s5 + $0x4] sm:$0xf]
  %v206 = vld [vmem:[%s5 + $0x8] sm:$0xf]
  %v207 = vld [vmem:[%s5 + $0xc] sm:$0xf]
  %v208 = vld [vmem:[%s5 + $0x10] sm:$0xf]
  %v209 = vld [vmem:[%s5 + $0x14] sm:$0xf]
  %v210 = vld [vmem:[%s5 + $0x18] sm:$0xf]
  %v211 = vld [vmem:[%s5 + $0x1c] sm:$0xf]
  %v212 = vld [vmem:[%s5 + $0x20] sm:$0xf]
  %v213 = vld [vmem:[%s5 + $0x24] sm:$0xf]
  %v214 = vld [vmem:[%s5 + $0x28] sm:$0xf]
  %v215 = vld [vmem:[%s5 + $0x2c] sm:$0xf]
  %v216 = vld [vmem:[%s5 + $0x30] sm:$0xf]
  %v217 = vld [vmem:[%s5 + $0x34] sm:$0xf]
  %v218 = vld [vmem:[%s5 + $0x38] sm:$0xf]
  %v219 = vld [vmem:[%s5 + $0x3c] sm:$0xf]
  %v220 = vld [vmem:[%s6] sm:$0x1]
  %v222 = vperm.slane %v220, 0
  %v240 = vunpack.c.l.b16 %v204
  %v241 = vunpack.c.l.b16 %v205
  %v242 = vunpack.c.l.b16 %v206
  %v243 = vunpack.c.l.b16 %v207
  %v244 = vunpack.c.l.b16 %v208
  %v245 = vunpack.c.l.b16 %v209
  %v246 = vunpack.c.l.b16 %v210
  %v247 = vunpack.c.l.b16 %v211
  %v248 = vunpack.c.l.b16 %v212
  %v249 = vunpack.c.l.b16 %v213
  %v250 = vunpack.c.l.b16 %v214
  %v251 = vunpack.c.l.b16 %v215
  %v252 = vunpack.c.l.b16 %v216
  %v253 = vunpack.c.l.b16 %v217
  %v254 = vunpack.c.l.b16 %v218
  %v255 = vunpack.c.l.b16 %v219
  %v256 = vpack.c.b16 %v241, %v240
  %v257 = vpack.c.b16 %v243, %v242
  %v258 = vpack.c.b16 %v245, %v244
  %v259 = vpack.c.b16 %v247, %v246
  %v260 = vpack.c.b16 %v249, %v248
  %v261 = vpack.c.b16 %v251, %v250
  %v262 = vpack.c.b16 %v253, %v252
  %v263 = vpack.c.b16 %v255, %v254
  %272 = vmatpush.bf16.msra.mxu0 %v263
  %273 = vmatpush.bf16.msra.mxu0 %v262
  %274 = vmatpush.bf16.msra.mxu0 %v261
  %275 = vmatpush.bf16.msra.mxu0 %v260
  %276 = vmatpush.bf16.msra.mxu0 %v259
  %277 = vmatpush.bf16.msra.mxu0 %v258
  %278 = vmatpush.bf16.msra.mxu0 %v257
  %279 = vmatpush.bf16.msra.mxu0 %v256
  %280 = vmatmul.bf16.gmra.mxu0 %v203
  %v281 = vpop.f32.mrf.mxu0
  %v282 = vadd.f32 %v222, %v281
  %v283 = vpop.f32.mrf.mxu0
  %v284 = vadd.f32 %v222, %v283
  %285 = vdwg.mxu0
  %286 = vst [vmem:[%s7] sm:$0xff] %v282
  %287 = vst [vmem:[%s7 + $0x8] sm:$0xff] %v284
  // Predicated region
  $region30: #{projector.1} parent=0 // pred_check
    _
  $region31: #{projector.1} parent=0 // pred_check_branch
    %289 = sbr.rel (0) target = $region33
  $region32: #{projector.1} parent=0 // pred_region
    _
  $region33: #{projector.1} parent=0 // pred_fallthru
    _
  // Predicated region
  $region34: #{projector.1} parent=0 // pred_check
    _
  $region35: #{projector.1} parent=0 // pred_check_branch
    %291 = sbr.rel (0) target = $region37
  $region36: #{projector.1} parent=0 // pred_region
    _
  $region37: #{projector.1} parent=0 // pred_fallthru
    _

// kernel: projector.1
$region0: #{projector.1}
  #allocation0 [shape = 'u32[]', space=smem, size = 0x4, offset = 0x4, fixed_abs, tag = 'smem constant byte address 0x4 - core index']
  #allocation1 [shape = 'u32[72,128]{1,0:T(1,128)}', space=vmem, size = 0x9000, scoped, tag = 'internal scratch']
  %s0 = inlined_call_operand.vmem [shape: bf16[16,128], index: 0, kind: input, shape index: {}]
  %s1 = inlined_call_operand.vmem [shape: bf16[128,128], index: 1, kind: input, shape index: {}]
  %s2 = inlined_call_operand.vmem [shape: f32[1,128], index: 2, kind: input, shape index: {}]
  %s3 = inlined_call_operand.vmem [shape: bf16[128,128], index: 3, kind: input, shape index: {}]
  %s4 = inlined_call_operand.vmem [shape: f32[1,128], index: 4, kind: input, shape index: {}]
  %s5 = inlined_call_operand.vmem [shape: bf16[128,128], index: 5, kind: input, shape index: {}]
  %s6 = inlined_call_operand.vmem [shape: f32[1,128], index: 6, kind: input, shape index: {}]
  %s7 = inlined_call_operand.vmem [shape: f32[16,128], index: 7, kind: output, shape index: {}]
  %s8 = sld [smem:[#allocation0]]
  $region38: #{projector.1} parent=0
    _
  %s10 = ssub.s32 1, %s8
  %s11 = scalar_select 0, %s10, %s8
  // Predicated region
  $region2: #{projector.1} parent=0 // pred_check
    _
  $region3: #{projector.1} parent=0 // pred_check_branch
    %13 = sbr.rel (0) target = $region5
  $region4: #{projector.1} parent=0 // pred_region
    _
  $region5: #{projector.1} parent=0 // pred_fallthru
    _
  // Predicated region
  $region6: #{projector.1} parent=0 // pred_check
    _
  $region7: #{projector.1} parent=0 // pred_check_branch
    %15 = sbr.rel (0) target = $region9
  $region8: #{projector.1} parent=0 // pred_region
    _
  $region9: #{projector.1} parent=0 // pred_fallthru
    _
  // Predicated region
  $region10: #{projector.1} parent=0 // pred_check
    _
  $region11: #{projector.1} parent=0 // pred_check_branch
    %17 = sbr.rel (0) target = $region13
  $region12: #{projector.1} parent=0 // pred_region
    _
  $region13: #{projector.1} parent=0 // pred_fallthru
    _
  // Predicated region
  $region14: #{projector.1} parent=0 // pred_check
    _
  $region15: #{projector.1} parent=0 // pred_check_branch
    %19 = sbr.rel (0) target = $region17
  $region16: #{projector.1} parent=0 // pred_region
    _
  $region17: #{projector.1} parent=0 // pred_fallthru
    _
  // Predicated region
  $region18: #{projector.1} parent=0 // pred_check
    _
  $region19: #{projector.1} parent=0 // pred_check_branch
    %21 = sbr.rel (0) target = $region21
  $region20: #{projector.1} parent=0 // pred_region
    _
  $region21: #{projector.1} parent=0 // pred_fallthru
    _
  // Predicated region
  $region22: #{projector.1} parent=0 // pred_check
    _
  $region23: #{projector.1} parent=0 // pred_check_branch
    %23 = sbr.rel (0) target = $region25
  $region24: #{projector.1} parent=0 // pred_region
    _
  $region25: #{projector.1} parent=0 // pred_fallthru
    _
  // Predicated region
  $region26: #{projector.1} parent=0 // pred_check
    _
  $region27: #{projector.1} parent=0 // pred_check_branch
    %25 = sbr.rel (0) target = $region29
  $region28: #{projector.1} parent=0 // pred_region
    _
  $region29: #{projector.1} parent=0 // pred_fallthru
    _
  %v26 = vld [vmem:[%s0] sm:$0xf]
  %v27 = vld [vmem:[%s0 + $0x4] sm:$0xf]
  %v28 = vld [vmem:[%s1] sm:$0xf]
  %v29 = vld [vmem:[%s1 + $0x4] sm:$0xf]
  %v30 = vld [vmem:[%s1 + $0x8] sm:$0xf]
  %v31 = vld [vmem:[%s1 + $0xc] sm:$0xf]
  %v32 = vld [vmem:[%s1 + $0x10] sm:$0xf]
  %v33 = vld [vmem:[%s1 + $0x14] sm:$0xf]
  %v34 = vld [vmem:[%s1 + $0x18] sm:$0xf]
  %v35 = vld [vmem:[%s1 + $0x1c] sm:$0xf]
  %v36 = vld [vmem:[%s1 + $0x20] sm:$0xf]
  %v37 = vld [vmem:[%s1 + $0x24] sm:$0xf]
  %v38 = vld [vmem:[%s1 + $0x28] sm:$0xf]
  %v39 = vld [vmem:[%s1 + $0x2c] sm:$0xf]
  %v40 = vld [vmem:[%s1 + $0x30] sm:$0xf]
  %v41 = vld [vmem:[%s1 + $0x34] sm:$0xf]
  %v42 = vld [vmem:[%s1 + $0x38] sm:$0xf]
  %v43 = vld [vmem:[%s1 + $0x3c] sm:$0xf]
  %v44 = vld [vmem:[%s2] sm:$0x1]
  %v46 = vperm.slane %v44, 0
  %v50 = vunpack.c.l.b16 %v26
  %v51 = vunpack.c.l.b16 %v27
  %v52 = vpack.c.b16 %v51, %v50
  %v70 = vunpack.c.l.b16 %v28
  %v71 = vunpack.c.l.b16 %v29
  %v72 = vunpack.c.l.b16 %v30
  %v73 = vunpack.c.l.b16 %v31
  %v74 = vunpack.c.l.b16 %v32
  %v75 = vunpack.c.l.b16 %v33
  %v76 = vunpack.c.l.b16 %v34
  %v77 = vunpack.c.l.b16 %v35
  %v78 = vunpack.c.l.b16 %v36
  %v79 = vunpack.c.l.b16 %v37
  %v80 = vunpack.c.l.b16 %v38
  %v81 = vunpack.c.l.b16 %v39
  %v82 = vunpack.c.l.b16 %v40
  %v83 = vunpack.c.l.b16 %v41
  %v84 = vunpack.c.l.b16 %v42
  %v85 = vunpack.c.l.b16 %v43
  %v86 = vpack.c.b16 %v71, %v70
  %v87 = vpack.c.b16 %v73, %v72
  %v88 = vpack.c.b16 %v75, %v74
  %v89 = vpack.c.b16 %v77, %v76
  %v90 = vpack.c.b16 %v79, %v78
  %v91 = vpack.c.b16 %v81, %v80
  %v92 = vpack.c.b16 %v83, %v82
  %v93 = vpack.c.b16 %v85, %v84
  %102 = vmatpush.bf16.msra.mxu0 %v93
  %103 = vmatpush.bf16.msra.mxu0 %v92
  %104 = vmatpush.bf16.msra.mxu0 %v91
  %105 = vmatpush.bf16.msra.mxu0 %v90
  %106 = vmatpush.bf16.msra.mxu0 %v89
  %107 = vmatpush.bf16.msra.mxu0 %v88
  %108 = vmatpush.bf16.msra.mxu0 %v87
  %109 = vmatpush.bf16.msra.mxu0 %v86
  %110 = vmatmul.bf16.gmra.mxu0 %v52
  %v111 = vpop.f32.mrf.mxu0
  %v112 = vadd.f32 %v46, %v111
  %v113 = vpop.f32.mrf.mxu0
  %v114 = vadd.f32 %v46, %v113
  %115 = vdwg.mxu0
  %v116 = vmax.f32 %v112, 0.0
  %v117 = vmax.f32 %v114, 0.0
  %v118 = vpack.c.bf16 %v117, %v116
  %v119 = vld [vmem:[%s3] sm:$0xf]
  %v120 = vld [vmem:[%s3 + $0x4] sm:$0xf]
  %v121 = vld [vmem:[%s3 + $0x8] sm:$0xf]
  %v122 = vld [vmem:[%s3 + $0xc] sm:$0xf]
  %v123 = vld [vmem:[%s3 + $0x10] sm:$0xf]
  %v124 = vld [vmem:[%s3 + $0x14] sm:$0xf]
  %v125 = vld [vmem:[%s3 + $0x18] sm:$0xf]
  %v126 = vld [vmem:[%s3 + $0x1c] sm:$0xf]
  %v127 = vld [vmem:[%s3 + $0x20] sm:$0xf]
  %v128 = vld [vmem:[%s3 + $0x24] sm:$0xf]
  %v129 = vld [vmem:[%s3 + $0x28] sm:$0xf]
  %v130 = vld [vmem:[%s3 + $0x2c] sm:$0xf]
  %v131 = vld [vmem:[%s3 + $0x30] sm:$0xf]
  %v132 = vld [vmem:[%s3 + $0x34] sm:$0xf]
  %v133 = vld [vmem:[%s3 + $0x38] sm:$0xf]
  %v134 = vld [vmem:[%s3 + $0x3c] sm:$0xf]
  %v135 = vld [vmem:[%s4] sm:$0x1]
  %v137 = vperm.slane %v135, 0
  %v155 = vunpack.c.l.b16 %v119
  %v156 = vunpack.c.l.b16 %v120
  %v157 = vunpack.c.l.b16 %v121
  %v158 = vunpack.c.l.b16 %v122
  %v159 = vunpack.c.l.b16 %v123
  %v160 = vunpack.c.l.b16 %v124
  %v161 = vunpack.c.l.b16 %v125
  %v162 = vunpack.c.l.b16 %v126
  %v163 = vunpack.c.l.b16 %v127
  %v164 = vunpack.c.l.b16 %v128
  %v165 = vunpack.c.l.b16 %v129
  %v166 = vunpack.c.l.b16 %v130
  %v167 = vunpack.c.l.b16 %v131
  %v168 = vunpack.c.l.b16 %v132
  %v169 = vunpack.c.l.b16 %v133
  %v170 = vunpack.c.l.b16 %v134
  %v171 = vpack.c.b16 %v156, %v155
  %v172 = vpack.c.b16 %v158, %v157
  %v173 = vpack.c.b16 %v160, %v159
  %v174 = vpack.c.b16 %v162, %v161
  %v175 = vpack.c.b16 %v164, %v163
  %v176 = vpack.c.b16 %v166, %v165
  %v177 = vpack.c.b16 %v168, %v167
  %v178 = vpack.c.b16 %v170, %v169
  %187 = vmatpush.bf16.msra.mxu0 %v178
  %188 = vmatpush.bf16.msra.mxu0 %v177
  %189 = vmatpush.bf16.msra.mxu0 %v176
  %190 = vmatpush.bf16.msra.mxu0 %v175
  %191 = vmatpush.bf16.msra.mxu0 %v174
  %192 = vmatpush.bf16.msra.mxu0 %v173
  %193 = vmatpush.bf16.msra.mxu0 %v172
  %194 = vmatpush.bf16.msra.mxu0 %v171
  %195 = vmatmul.bf16.gmra.mxu0 %v118
  %v196 = vpop.f32.mrf.mxu0
  %v197 = vadd.f32 %v137, %v196
  %v198 = vpop.f32.mrf.mxu0
  %v199 = vadd.f32 %v137, %v198
  %200 = vdwg.mxu0
  %v201 = vmax.f32 %v197, 0.0
  %v202 = vmax.f32 %v199, 0.0
  %v203 = vpack.c.bf16 %v202, %v201
  %v204 = vld [vmem:[%s5] sm:$0xf]
  %v205 = vld [vmem:[%s5 + $0x4] sm:$0xf]
  %v206 = vld [vmem:[%s5 + $0x8] sm:$0xf]
  %v207 = vld [vmem:[%s5 + $0xc] sm:$0xf]
  %v208 = vld [vmem:[%s5 + $0x10] sm:$0xf]
  %v209 = vld [vmem:[%s5 + $0x14] sm:$0xf]
  %v210 = vld [vmem:[%s5 + $0x18] sm:$0xf]
  %v211 = vld [vmem:[%s5 + $0x1c] sm:$0xf]
  %v212 = vld [vmem:[%s5 + $0x20] sm:$0xf]
  %v213 = vld [vmem:[%s5 + $0x24] sm:$0xf]
  %v214 = vld [vmem:[%s5 + $0x28] sm:$0xf]
  %v215 = vld [vmem:[%s5 + $0x2c] sm:$0xf]
  %v216 = vld [vmem:[%s5 + $0x30] sm:$0xf]
  %v217 = vld [vmem:[%s5 + $0x34] sm:$0xf]
  %v218 = vld [vmem:[%s5 + $0x38] sm:$0xf]
  %v219 = vld [vmem:[%s5 + $0x3c] sm:$0xf]
  %v220 = vld [vmem:[%s6] sm:$0x1]
  %v222 = vperm.slane %v220, 0
  %v240 = vunpack.c.l.b16 %v204
  %v241 = vunpack.c.l.b16 %v205
  %v242 = vunpack.c.l.b16 %v206
  %v243 = vunpack.c.l.b16 %v207
  %v244 = vunpack.c.l.b16 %v208
  %v245 = vunpack.c.l.b16 %v209
  %v246 = vunpack.c.l.b16 %v210
  %v247 = vunpack.c.l.b16 %v211
  %v248 = vunpack.c.l.b16 %v212
  %v249 = vunpack.c.l.b16 %v213
  %v250 = vunpack.c.l.b16 %v214
  %v251 = vunpack.c.l.b16 %v215
  %v252 = vunpack.c.l.b16 %v216
  %v253 = vunpack.c.l.b16 %v217
  %v254 = vunpack.c.l.b16 %v218
  %v255 = vunpack.c.l.b16 %v219
  %v256 = vpack.c.b16 %v241, %v240
  %v257 = vpack.c.b16 %v243, %v242
  %v258 = vpack.c.b16 %v245, %v244
  %v259 = vpack.c.b16 %v247, %v246
  %v260 = vpack.c.b16 %v249, %v248
  %v261 = vpack.c.b16 %v251, %v250
  %v262 = vpack.c.b16 %v253, %v252
  %v263 = vpack.c.b16 %v255, %v254
  %272 = vmatpush.bf16.msra.mxu0 %v263
  %273 = vmatpush.bf16.msra.mxu0 %v262
  %274 = vmatpush.bf16.msra.mxu0 %v261
  %275 = vmatpush.bf16.msra.mxu0 %v260
  %276 = vmatpush.bf16.msra.mxu0 %v259
  %277 = vmatpush.bf16.msra.mxu0 %v258
  %278 = vmatpush.bf16.msra.mxu0 %v257
  %279 = vmatpush.bf16.msra.mxu0 %v256
  %280 = vmatmul.bf16.gmra.mxu0 %v203
  %v281 = vpop.f32.mrf.mxu0
  %v282 = vadd.f32 %v222, %v281
  %v283 = vpop.f32.mrf.mxu0
  %v284 = vadd.f32 %v222, %v283
  %285 = vdwg.mxu0
  %286 = vst [vmem:[%s7] sm:$0xff] %v282
  %287 = vst [vmem:[%s7 + $0x8] sm:$0xff] %v284
  // Predicated region
  $region30: #{projector.1} parent=0 // pred_check
    _
  $region31: #{projector.1} parent=0 // pred_check_branch
    %289 = sbr.rel (0) target = $region33
  $region32: #{projector.1} parent=0 // pred_region
    _
  $region33: #{projector.1} parent=0 // pred_fallthru
    _
  // Predicated region
  $region34: #{projector.1} parent=0 // pred_check
    _
  $region35: #{projector.1} parent=0 // pred_check_branch
    %291 = sbr.rel (0) target = $region37
  $region36: #{projector.1} parent=0 // pred_region
    _
  $region37: #{projector.1} parent=0 // pred_fallthru
    _

</llo_original>
